<compile_context>
chip_gen: v5e
topology: v5e:2x2
jax: 0.10.0
libtpu: 0.0.40
codegen_flags: <defaults>
</compile_context>

<pallas_src>
import functools

import jax
import jax.numpy as jnp
from jax import lax
from jax.experimental import pallas as pl
from jax.experimental.pallas import tpu as pltpu


# --------------------------------------------------------------------------
# Fast path: embedding table resident in VMEM, gather on the MXU.
# --------------------------------------------------------------------------
def _resident_table_kernel(tok_ref, sp_hbm, wte_ref, out_ref, sem, *,
                           prompt_len, seq_len, vocab):
    """One batch element per grid step.

    tok_ref : (1, T, 1) int32 VMEM  token ids (column layout -> lane broadcast)
    sp_hbm  : (B, P, D)       HBM   soft prompts (memory_space=pl.ANY)
    wte_ref : (V, D)          VMEM  full embedding table (resident)
    out_ref : (1, P+T, D)     VMEM  fused output block
    sem     : (1,)            DMA   semaphore for the prompt copy
    """
    b = pl.program_id(0)

    # Soft prompts: one DMA straight from HBM into output rows [0, P).
    # Overlaps with the MXU gather below; waited at the end of the step.
    sp_cp = pltpu.make_async_copy(
        sp_hbm.at[b],                               # (P, D) slab in HBM
        out_ref.at[0, pl.ds(0, prompt_len), :],     # (P, D) rows of the block
        sem.at[0],
    )
    sp_cp.start()

    # Embedding gather as a one-hot @ table MXU matmul.  Ids are clamped so
    # the semantics match jnp.take / lax.gather clipping (PyTorch nn.Embedding
    # would raise on out-of-range ids instead).
    tok_col = jnp.clip(tok_ref[0], 0, vocab - 1)                    # (T, 1)
    pos = lax.broadcasted_iota(jnp.int32, (seq_len, vocab), 1)      # (T, V)
    onehot = (pos == tok_col).astype(wte_ref.dtype)                 # (T, V)
    emb = jnp.dot(onehot, wte_ref[...],
                  preferred_element_type=jnp.float32)               # (T, D)
    out_ref[0, pl.ds(prompt_len, seq_len), :] = emb.astype(out_ref.dtype)

    sp_cp.wait()


def _resident_table_call(tokens, soft_prompts, wte):
    b, t = tokens.shape
    _, p, d = soft_prompts.shape
    v, _ = wte.shape
    out_dtype = wte.dtype
    elem = jnp.dtype(out_dtype).itemsize

    tokens_col = tokens.astype(jnp.int32).reshape(b, t, 1)

    table_bytes = v * d * elem
    out_block_bytes = (p + t) * d * elem
    work_bytes = t * v * (4 + elem) + t * d * 4          # iota + one-hot + f32 acc
    vmem_need = table_bytes + 2 * out_block_bytes + 2 * t * 4 + work_bytes
    vmem_limit = int(min(max(2 * vmem_need, 8 << 20), 100 << 20))

    cost = pl.CostEstimate(
        flops=2 * b * t * v * d,                          # one-hot matmul
        transcendentals=0,
        bytes_accessed=int(b * t * 4 + b * p * d * elem + table_bytes
                           + b * (p + t) * d * elem),
    )

    kernel = functools.partial(_resident_table_kernel,
                               prompt_len=p, seq_len=t, vocab=v)

    return pl.pallas_call(
        kernel,
        out_shape=jax.ShapeDtypeStruct((b, p + t, d), out_dtype),
        grid_spec=pltpu.PrefetchScalarGridSpec(
            num_scalar_prefetch=0,
            grid=(b,),
            in_specs=[
                pl.BlockSpec((1, t, 1), lambda i: (i, 0, 0)),   # token ids
                pl.BlockSpec(memory_space=pl.ANY),              # soft prompts (HBM)
                pl.BlockSpec((v, d), lambda i: (0, 0)),         # resident table
            ],
            out_specs=pl.BlockSpec((1, p + t, d), lambda i: (i, 0, 0)),
            scratch_shapes=[pltpu.SemaphoreType.DMA((1,))],
        ),
        compiler_params=pltpu.CompilerParams(
            dimension_semantics=("parallel",),     # shard batch across TCs (v7x)
            vmem_limit_bytes=vmem_limit,
        ),
        cost_estimate=cost,
    )(tokens_col, soft_prompts, wte)


# --------------------------------------------------------------------------
# Fallback path: table too big for VMEM -> HBM->HBM row DMAs, rolling window.
# --------------------------------------------------------------------------
def _hbm_gather_kernel(tok_ref, sp_hbm, wte_hbm, out_hbm, row_sems, sp_sem, *,
                       prompt_len, seq_len, vocab, window):
    """One batch element per grid step; everything stays in HBM.

    tok_ref : (B*T,) int32 SMEM  scalar-prefetched flattened token ids
    sp_hbm  : (B, P, D)    HBM   soft prompts
    wte_hbm : (V, D)       HBM   embedding table
    out_hbm : (B, P+T, D)  HBM   fused output (written only via DMA)
    row_sems: (window,)    DMA   round-robin semaphore bank for row copies
    sp_sem  : (1,)         DMA   semaphore for the prompt slab copy
    """
    b = pl.program_id(0)

    # Prompt slab: one (P, D) HBM->HBM DMA into output rows [0, P).
    sp_cp = pltpu.make_async_copy(
        sp_hbm.at[b], out_hbm.at[b, pl.ds(0, prompt_len), :], sp_sem.at[0])
    sp_cp.start()

    def _slot(t):
        return t & (window - 1)                 # window is a power of two

    def _start_row(t):
        tok_id = jnp.clip(tok_ref[b * seq_len + t], 0, vocab - 1)
        pltpu.make_async_copy(
            wte_hbm.at[tok_id],                 # (D,) table row
            out_hbm.at[b, prompt_len + t],      # (D,) output row
            row_sems.at[_slot(t)],
        ).start()

    def _wait_row(t):
        # .wait() depends only on shapes + semaphore; dummy row-0 refs are fine.
        pltpu.make_async_copy(
            wte_hbm.at[0], out_hbm.at[b, prompt_len], row_sems.at[_slot(t)],
        ).wait()

    n_inflight = min(window, seq_len)
    for t in range(n_inflight):                 # prime the window (<= window)
        _start_row(t)
    if seq_len > n_inflight:                    # steady state: 1 wait, 1 start
        @pl.loop(0, seq_len - n_inflight)
        def _(i):
            _wait_row(i)
            _start_row(i + n_inflight)
    for k in range(n_inflight):                 # drain
        _wait_row(seq_len - n_inflight + k)
    sp_cp.wait()


def _hbm_gather_call(tokens, soft_prompts, wte, *, window=8):
    b, t = tokens.shape
    _, p, d = soft_prompts.shape
    v, _ = wte.shape
    out_dtype = wte.dtype
    elem = jnp.dtype(out_dtype).itemsize

    tokens_flat = tokens.astype(jnp.int32).reshape(-1)   # 1-D: no SMEM padding

    cost = pl.CostEstimate(
        flops=0,
        transcendentals=0,
        bytes_accessed=int(b * t * 4
                           + 2 * b * p * d * elem        # prompt read + write
                           + 2 * b * t * d * elem),      # row read + write
    )

    kernel = functools.partial(_hbm_gather_kernel, prompt_len=p, seq_len=t,
                               vocab=v, window=window)

    return pl.pallas_call(
        kernel,
        out_shape=jax.ShapeDtypeStruct((b, p + t, d), out_dtype),
        grid_spec=pltpu.PrefetchScalarGridSpec(
            num_scalar_prefetch=1,                        # tokens -> SMEM
            grid=(b,),
            in_specs=[
                pl.BlockSpec(memory_space=pl.ANY),        # soft prompts (HBM)
                pl.BlockSpec(memory_space=pl.ANY),        # wte (HBM)
            ],
            out_specs=pl.BlockSpec(memory_space=pl.ANY),  # output written by DMA
            scratch_shapes=[pltpu.SemaphoreType.DMA((window,)),
                            pltpu.SemaphoreType.DMA((1,))],
        ),
        compiler_params=pltpu.CompilerParams(
            dimension_semantics=("arbitrary",),
            has_side_effects=True,
        ),
        cost_estimate=cost,
    )(tokens_flat, soft_prompts, wte)


# --------------------------------------------------------------------------
# Dispatch + module wrapper.
# --------------------------------------------------------------------------
_RESIDENT_TABLE_BUDGET = 24 << 20   # conservative: fits v5e/v7x scoped-VMEM defaults


def dynamic_soft_embedding_pallas(tokens, soft_prompts, wte):
    """tokens (B, T) int, soft_prompts (B, P, D), wte (V, D) -> (B, P+T, D)."""
    b, t = tokens.shape
    bs, p, d = soft_prompts.shape
    v, d2 = wte.shape
    assert bs == b and d2 == d
    assert p > 0 and t > 0, "empty prompt / token sequence not supported"
    assert soft_prompts.dtype == wte.dtype, "torch.cat requires matching dtypes"

    elem = jnp.dtype(wte.dtype).itemsize
    resident_need = (v * d * elem                       # table
                     + 2 * (p + t) * d * elem           # double-buffered output
                     + t * v * (4 + elem) + t * d * 4)  # iota / one-hot / f32 acc

    if resident_need <= _RESIDENT_TABLE_BUDGET:
        return _resident_table_call(tokens, soft_prompts, wte)
    # TODO(synk): add a sequence-tiled VMEM path (tile the P+T axis with a
    # second "parallel" grid dim and pl.when-gated prompt writes) for tables
    # that fit VMEM but whose (P+T, D) output slab does not.
    return _hbm_gather_call(tokens, soft_prompts, wte)


class DynamicSoftEmbedding:
    """JAX/Pallas port of the PyTorch module (deterministic, synthetic init)."""

    def __init__(self, wte_weight: jax.Array, bos_token_id: int):
        self.wte_weight = wte_weight                      # (V, D)
        self.bos_token_embed = wte_weight[bos_token_id]   # buffer; unused in forward

    def __call__(self, tokens: jax.Array, soft_prompts: jax.Array) -> jax.Array:
        return dynamic_soft_embedding_pallas(tokens, soft_prompts, self.wte_weight)


if __name__ == "__main__":
    # Small deterministic shapes consistent with the module's forward.
    B, T, P = 2, 8, 4        # batch, token seq len, soft-prompt len
    V, D = 64, 128           # vocab size, embedding dim
    BOS_TOKEN_ID = 1

    key = jax.random.PRNGKey(0)
    k_wte, k_tok, k_sp = jax.random.split(key, 3)

    wte_weight = jax.random.normal(k_wte, (V, D), dtype=jnp.float32)
    tokens = jax.random.randint(k_tok, (B, T), minval=0, maxval=V, dtype=jnp.int32)
    soft_prompts = jax.random.normal(k_sp, (B, P, D), dtype=jnp.float32)

    model = DynamicSoftEmbedding(wte_weight, BOS_TOKEN_ID)
    out = model(tokens, soft_prompts)
    out = jax.block_until_ready(out)

    # Reference check against plain JAX semantics of the PyTorch forward.
    ref = jnp.concatenate([soft_prompts, jnp.take(wte_weight, tokens, axis=0)], axis=1)
    assert out.shape == (B, P + T, D), out.shape
    assert jnp.allclose(out, ref, atol=1e-6), "mismatch vs reference"

    print("KERNEL_OK")
</pallas_src>

<mosaic_0001>
module attributes {stable_mosaic.version = 11 : i64} {
  func.func @_resident_table_kernel(%arg0: i32, %arg1: memref<1x8x1xi32, #tpu.memory_space<vmem>>, %arg2: memref<2x4x128xf32, #tpu.memory_space<any>>, %arg3: memref<64x128xf32, #tpu.memory_space<vmem>>, %arg4: memref<1x12x128xf32, #tpu.memory_space<vmem>>, %arg5: memref<1x!tpu.dma_semaphore, #tpu.memory_space<semaphore_mem>>) attributes {dimension_semantics = [#tpu.dimension_semantics<parallel>], iteration_bounds = array<i64: 2>, scalar_prefetch = 0 : i64, scratch_operands = 1 : i64, tpu.core_type = #tpu.core_type<tc>, window_params = [{transform_indices = @transform_0, window_bounds = array<i64: 1, 8, 1>}, {}, {pipeline_mode = #tpu.pipeline_mode<synchronous>, transform_indices = @transform_2, window_bounds = array<i64: 64, 128>}, {transform_indices = @transform_3, window_bounds = array<i64: 1, 12, 128>}]} {
    %c0_i32 = arith.constant 0 : i32
    %c0_i32_0 = arith.constant 0 : i32
    %c0_i32_1 = arith.constant 0 : i32
    %c0_i32_2 = arith.constant 0 : i32
    %0 = tpu.memref_slice %arg2[%arg0, %c0_i32_1, %c0_i32_2] : memref<2x4x128xf32, #tpu.memory_space<any>> -> memref<1x4x128xf32, #tpu.memory_space<any>>
    %1 = tpu.memref_squeeze %0 : memref<1x4x128xf32, #tpu.memory_space<any>> -> memref<4x128xf32, #tpu.memory_space<any>>
    %c0_i32_3 = arith.constant 0 : i32
    %c0_i32_4 = arith.constant 0 : i32
    %2 = tpu.memref_slice %arg4[%c0_i32, %c0_i32_3, %c0_i32_4] : memref<1x12x128xf32, #tpu.memory_space<vmem>> -> memref<1x4x128xf32, #tpu.memory_space<vmem>>
    %3 = tpu.memref_squeeze %2 : memref<1x4x128xf32, #tpu.memory_space<vmem>> -> memref<4x128xf32, #tpu.memory_space<vmem>>
    %4 = tpu.memref_slice %arg5[%c0_i32_0] : memref<1x!tpu.dma_semaphore, #tpu.memory_space<semaphore_mem>> -> memref<1x!tpu.dma_semaphore, #tpu.memory_space<semaphore_mem>>
    %5 = tpu.memref_squeeze %4 : memref<1x!tpu.dma_semaphore, #tpu.memory_space<semaphore_mem>> -> memref<!tpu.dma_semaphore, #tpu.memory_space<semaphore_mem>>
    tpu.enqueue_dma source(%1 : memref<4x128xf32, #tpu.memory_space<any>>) target(%3 : memref<4x128xf32, #tpu.memory_space<vmem>>) target_semaphore(%5 : memref<!tpu.dma_semaphore, #tpu.memory_space<semaphore_mem>>)
    %c0 = arith.constant 0 : index
    %c0_5 = arith.constant 0 : index
    %c0_6 = arith.constant 0 : index
    %6 = vector.load %arg1[%c0, %c0_5, %c0_6] : memref<1x8x1xi32, #tpu.memory_space<vmem>>, vector<1x8x1xi32>
    %7 = vector.shape_cast %6 : vector<1x8x1xi32> to vector<8x1xi32>
    %c0_i32_7 = arith.constant 0 : i32
    %c63_i32 = arith.constant 63 : i32
    %8 = vector.broadcast %c0_i32_7 : i32 to vector<8x1xi32>
    %9 = arith.maxsi %8, %7 : vector<8x1xi32>
    %10 = vector.broadcast %c63_i32 : i32 to vector<8x1xi32>
    %11 = arith.minsi %10, %9 : vector<8x1xi32>
    %12 = tpu.iota {dimensions = array<i32: 1>} : vector<8x64xi32>
    %13 = vector.broadcast %11 : vector<8x1xi32> to vector<8x64xi32>
    %14 = arith.cmpi eq, %12, %13 : vector<8x64xi32>
    %15 = arith.extui %14 : vector<8x64xi1> to vector<8x64xi32>
    %16 = arith.sitofp %15 : vector<8x64xi32> to vector<8x64xf32>
    %c0_8 = arith.constant 0 : index
    %c0_9 = arith.constant 0 : index
    %17 = vector.load %arg3[%c0_8, %c0_9] : memref<64x128xf32, #tpu.memory_space<vmem>>, vector<64x128xf32>
    %cst = arith.constant dense<0.000000e+00> : vector<8x128xf32>
    %18 = tpu.matmul %16, %17, %cst {dimension_numbers = #tpu.dot_dimension_numbers<[1], [0], [0], [1], [0, 0, 1, 1], [], []>} : vector<8x64xf32>, vector<64x128xf32>, vector<8x128xf32> -> vector<8x128xf32>
    %c0_10 = arith.constant 0 : index
    %c4 = arith.constant 4 : index
    %c0_11 = arith.constant 0 : index
    %19 = vector.load %arg4[%c0_10, %c4, %c0_11] : memref<1x12x128xf32, #tpu.memory_space<vmem>>, vector<1x8x128xf32>
    %20 = vector.shape_cast %19 : vector<1x8x128xf32> to vector<8x128xf32>
    %21 = vector.shape_cast %18 : vector<8x128xf32> to vector<1x8x128xf32>
    tpu.vector_store %arg4[%c0_10, %c4, %c0_11], %21 {strides = array<i32>} : memref<1x12x128xf32, #tpu.memory_space<vmem>>, vector<1x8x128xf32>,
    %c0_i32_12 = arith.constant 0 : i32
    %c0_i32_13 = arith.constant 0 : i32
    %c0_i32_14 = arith.constant 0 : i32
    %c0_i32_15 = arith.constant 0 : i32
    %22 = tpu.memref_slice %arg2[%arg0, %c0_i32_14, %c0_i32_15] : memref<2x4x128xf32, #tpu.memory_space<any>> -> memref<1x4x128xf32, #tpu.memory_space<any>>
    %23 = tpu.memref_squeeze %22 : memref<1x4x128xf32, #tpu.memory_space<any>> -> memref<4x128xf32, #tpu.memory_space<any>>
    %c0_i32_16 = arith.constant 0 : i32
    %c0_i32_17 = arith.constant 0 : i32
    %24 = tpu.memref_slice %arg4[%c0_i32_12, %c0_i32_16, %c0_i32_17] : memref<1x12x128xf32, #tpu.memory_space<vmem>> -> memref<1x4x128xf32, #tpu.memory_space<vmem>>
    %25 = tpu.memref_squeeze %24 : memref<1x4x128xf32, #tpu.memory_space<vmem>> -> memref<4x128xf32, #tpu.memory_space<vmem>>
    %26 = tpu.memref_slice %arg5[%c0_i32_13] : memref<1x!tpu.dma_semaphore, #tpu.memory_space<semaphore_mem>> -> memref<1x!tpu.dma_semaphore, #tpu.memory_space<semaphore_mem>>
    %27 = tpu.memref_squeeze %26 : memref<1x!tpu.dma_semaphore, #tpu.memory_space<semaphore_mem>> -> memref<!tpu.dma_semaphore, #tpu.memory_space<semaphore_mem>>
    tpu.wait_dma2 semaphore(%27 : memref<!tpu.dma_semaphore, #tpu.memory_space<semaphore_mem>>) src(%23 : memref<4x128xf32, #tpu.memory_space<any>>) dst(%25 : memref<4x128xf32, #tpu.memory_space<vmem>>)
    return
  }
  func.func @transform_0(%arg0: i32) -> (i32, i32, i32) {
    %c0_i32 = arith.constant 0 : i32
    %c0_i32_0 = arith.constant 0 : i32
    %c0_i32_1 = arith.constant 0 : i32
    return %arg0, %c0_i32, %c0_i32_0 : i32, i32, i32
  }
  func.func @transform_2(%arg0: i32) -> (i32, i32) {
    %c0_i32 = arith.constant 0 : i32
    %c0_i32_0 = arith.constant 0 : i32
    %c0_i32_1 = arith.constant 0 : i32
    return %c0_i32, %c0_i32_0 : i32, i32
  }
  func.func @transform_3(%arg0: i32) -> (i32, i32, i32) {
    %c0_i32 = arith.constant 0 : i32
    %c0_i32_0 = arith.constant 0 : i32
    %c0_i32_1 = arith.constant 0 : i32
    return %arg0, %c0_i32, %c0_i32_0 : i32, i32, i32
  }
}

</mosaic_0001>

<llo_original>
// kernel: tpu_custom_call.1
$region0: #{tpu_custom_call.1}
  #allocation0 [shape = 'u32[]', space=smem, size = 0x4, offset = 0x4, fixed_abs, tag = 'smem constant byte address 0x4 - core index']
  #allocation1 [shape = 'u32[72,128]{1,0:T(1,128)}', space=vmem, size = 0x9000, scoped, tag = 'internal scratch']
  #allocation2 [shape = 's32[1]{0}', space=sflag, size = 0x4, scoped, tag = 'scratch operand']
  #allocation5 [shape = 's32[]', space=sflag, size = 0x4, offset = 0, fixed_abs, tag = 'sflag constant byte address 0x0 - dummy sync flag']
  %s0 = inlined_call_operand.vmem [shape: s32[2,8,1], index: 0, kind: input, shape index: {}]
  %s1 = inlined_call_operand.vmem [shape: f32[2,4,128], index: 1, kind: input, shape index: {}]
  %s2 = inlined_call_operand.hbm [shape: f32[64,128], index: 2, kind: input, shape index: {}]
  %s3 = inlined_call_operand.vmem [shape: f32[2,12,128], index: 3, kind: output, shape index: {}]
  %s4 = sld [smem:[#allocation0]]
  $region75: #{tpu_custom_call.1} parent=0
    _
  %s6 = ssub.s32 1, %s4
  %s7 = scalar_select 0, %s6, %s4
  $region1: #{tpu_custom_call.1} parent=0
    #allocation3 [shape = 'u8[32768]{0}', space=vmem, size = 0x8000, scoped, tag = 'input window, operand 2, single buffered']
    #allocation4 [shape = 's32[2]{0}', space=sflag, size = 0x8, scoped, tag = 'scoped memory for tpu_custom_call.1']
    %8 = vsyncpa [#allocation4], 0
    loop: start=0, step=1, limit=4
    $region2: #{tpu_custom_call.1} parent=1 // loop_pre_header
      _
    $region3: #{tpu_custom_call.1} parent=1 // loop_header
      %s10 = sphi 0, %s14
      %p11 = scmp.ge.s32.totalorder %s10, 4
      %s20 = sphi 0, %s22
      %s23 = sphi 0, %s20
      %s24 = sphi 0, %s23
      %s40 = sphi 0, %s24
      %s44 = sphi 0, %s44
      %s46 = sphi 0, %s44
      %s47 = sphi 0, %s46
      %s61 = sphi 0, %s47
      %s67 = sphi 0, %s69
      %s70 = sphi 0, %s67
      %s71 = sphi 0, %s70
      %s87 = sphi 0, %s71
    $region4: #{tpu_custom_call.1} parent=1 // loop_header_branch
      %13 = sbr.rel (%p11) target = $region8
    $region5: #{tpu_custom_call.1} parent=1 // loop_body
      %s15 = ssub.s32 %s10, 1
      %s16 = ssub.s32 %s10, 2
      %s17 = sadd.s32 %s10, 1
      %s18 = ssub.s32 %s10, %s17
      %p19 = scmp.eq.s32.totalorder %s18, 0
      %s21 = sadd.s32 %s20, 1
      %s22 = scalar_select %p19, %s20, %s21
      %p25 = pneg %p19
      %p26 = scmp.eq.s32.totalorder %s10, 1
      %p27 = por %p25, %p26
      %p28 = scmp.ne.s32.totalorder %s20, %s23
      %p29 = scmp.eq.s32.totalorder %s10, 0
      %p30 = por %p28, %p29
      %p31 = scmp.ne.s32.totalorder %s20, %s23
      %p32 = scmp.eq.s32.totalorder %s15, 1
      %p33 = por %p31, %p32
      %p34 = scmp.ne.s32.totalorder %s23, %s24
      %p35 = scmp.eq.s32.totalorder %s15, 0
      %p36 = por %p34, %p35
      %p37 = scmp.ne.s32.totalorder %s23, %s24
      %p38 = scmp.eq.s32.totalorder %s16, 1
      %p39 = por %p37, %p38
      %p41 = scmp.ne.s32.totalorder %s24, %s40
      %p42 = scmp.eq.s32.totalorder %s16, 0
      %p43 = por %p41, %p42
      %s45 = sadd.s32 %s44, 1
      %p48 = scmp.eq.s32.totalorder %s10, 1
      %p49 = scmp.ne.s32.totalorder %s44, %s46
      %p50 = scmp.eq.s32.totalorder %s10, 0
      %p51 = por %p49, %p50
      %p52 = scmp.ne.s32.totalorder %s44, %s46
      %p53 = scmp.eq.s32.totalorder %s15, 1
      %p54 = por %p52, %p53
      %p55 = scmp.ne.s32.totalorder %s46, %s47
      %p56 = scmp.eq.s32.totalorder %s15, 0
      %p57 = por %p55, %p56
      %p58 = scmp.ne.s32.totalorder %s46, %s47
      %p59 = scmp.eq.s32.totalorder %s16, 1
      %p60 = por %p58, %p59
      %p62 = scmp.ne.s32.totalorder %s47, %s61
      %p63 = scmp.eq.s32.totalorder %s16, 0
      %p64 = por %p62, %p63
      %s65 = ssub.s32 %s10, %s17
      %p66 = scmp.eq.s32.totalorder %s65, 0
      %s68 = sadd.s32 %s67, 1
      %s69 = scalar_select %p66, %s67, %s68
      %p72 = pneg %p66
      %p73 = scmp.eq.s32.totalorder %s10, 1
      %p74 = por %p72, %p73
      %p75 = scmp.ne.s32.totalorder %s67, %s70
      %p76 = scmp.eq.s32.totalorder %s10, 0
      %p77 = por %p75, %p76
      %p78 = scmp.ne.s32.totalorder %s67, %s70
      %p79 = scmp.eq.s32.totalorder %s15, 1
      %p80 = por %p78, %p79
      %p81 = scmp.ne.s32.totalorder %s70, %s71
      %p82 = scmp.eq.s32.totalorder %s15, 0
      %p83 = por %p81, %p82
      %p84 = scmp.ne.s32.totalorder %s70, %s71
      %p85 = scmp.eq.s32.totalorder %s16, 1
      %p86 = por %p84, %p85
      %p88 = scmp.ne.s32.totalorder %s71, %s87
      %p89 = scmp.eq.s32.totalorder %s16, 0
      %p90 = por %p88, %p89
      %p91 = scmp.le.s32.totalorder 1, %s10
      %p92 = scmp.lt.s32.totalorder %s10, 3
      %p93 = pnand %p91, %p92
      %p94 = pneg %p93
      // Predicated region
      $region9: #{tpu_custom_call.1} parent=5 // pred_check
        _
      $region10: #{tpu_custom_call.1} parent=5 // pred_check_branch
        %96 = sbr.rel (%p93) target = $region12
      $region11: #{tpu_custom_call.1} parent=5 // pred_region
        %s97 = ssub.s32 %s10, 1
        // Predicated region
        $region13: #{tpu_custom_call.1} parent=11 // pred_check
          %p98 = pneg %p57
        $region14: #{tpu_custom_call.1} parent=11 // pred_check_branch
          %100 = sbr.rel (%p98) target = $region16
        $region15: #{tpu_custom_call.1} parent=11 // pred_region
          %102 = vsyncadd [#allocation4], 0
          %s103 = sshll.u32 %s2, 4
          %s104 = int_to_ptr.hbm [resolvable:$true] %s103
          %s105 = sshll.u32 [#allocation3], 4
          %s106 = int_to_ptr.vmem [resolvable:$true] %s105
          %111 = dma.hbm_to_vmem [thread:$0]  %s104, 1024, %s106, [#allocation4], 128, 128, 8
        $region16: #{tpu_custom_call.1} parent=11 // pred_fallthru
          _
      $region12: #{tpu_custom_call.1} parent=5 // pred_fallthru
        _
      %p112 = scmp.lt.s32.totalorder %s10, 2
      // Predicated region
      $region17: #{tpu_custom_call.1} parent=5 // pred_check
        %p113 = pneg %p112
      $region18: #{tpu_custom_call.1} parent=5 // pred_check_branch
        %115 = sbr.rel (%p113) target = $region20
      $region19: #{tpu_custom_call.1} parent=5 // pred_region
        // Predicated region
        $region21: #{tpu_custom_call.1} parent=19 // pred_check
          %p116 = pneg %p30
        $region22: #{tpu_custom_call.1} parent=19 // pred_check_branch
          %118 = sbr.rel (%p116) target = $region24
        $region23: #{tpu_custom_call.1} parent=19 // pred_region
          %p119 = scmp.lt.s32.totalorder %s10, 1
          %s120 = scalar_select %p119, %s10, 1
          %s121 = smul.addr %s120, 8
          %s122 = scalar_lea.vmem %s0, %s121
        $region24: #{tpu_custom_call.1} parent=19 // pred_fallthru
          _
      $region20: #{tpu_custom_call.1} parent=5 // pred_fallthru
        _
      %p123 = scmp.le.s32.totalorder 1, %s10
      %p124 = scmp.lt.s32.totalorder %s10, 3
      %p125 = pnand %p123, %p124
      %p126 = pneg %p125
      // Predicated region
      $region25: #{tpu_custom_call.1} parent=5 // pred_check
        _
      $region26: #{tpu_custom_call.1} parent=5 // pred_check_branch
        %128 = sbr.rel (%p125) target = $region28
      $region27: #{tpu_custom_call.1} parent=5 // pred_region
        %s129 = ssub.s32 %s10, 1
        // Predicated region
        $region29: #{tpu_custom_call.1} parent=27 // pred_check
          %p130 = pneg %p57
        $region30: #{tpu_custom_call.1} parent=27 // pred_check_branch
          %132 = sbr.rel (%p130) target = $region32
        $region31: #{tpu_custom_call.1} parent=27 // pred_region
          %134 = dma.done [#allocation4], 1024
        $region32: #{tpu_custom_call.1} parent=27 // pred_fallthru
          _
        %p135 = scmp.lt.s32.totalorder %s15, 1
        %s136 = scalar_select %p135, %s15, 1
        %s137 = smul.addr %s136, 8
        %s138 = scalar_lea.vmem %s0, %s137
        %p139 = pneg %p36
        %p140 = pneg %p33
        %p141 = pneg %p57
        %p142 = pneg %p54
        %p143 = pneg %p83
        %p144 = pneg %p80
        %p145 = scmp.lt.s32.totalorder %s15, 1
        %s146 = scalar_select %p145, %s15, 1
        %s147 = smul.addr %s146, 2
        %s148 = smul.addr %s147, 8
        %s149 = scalar_lea.vmem %s3, %s148
        %p150 = scmp.lt.s32.totalorder %s15, 1
        %s151 = scalar_select %p150, %s15, 1
        %s152 = smul.addr %s151, 8
        %s153 = scalar_lea.vmem %s0, %s152
        %p154 = scmp.lt.s32.totalorder %s15, 1
        %s155 = scalar_select %p154, %s15, 1
        %s156 = smul.addr %s155, 2
        %s157 = smul.addr %s156, 8
        %s158 = scalar_lea.vmem %s3, %s157
        %s159 = smul.u32 %s15, 4
        %s160 = scalar_lea.vmem %s1, %s159
        // Predicated region
        $region33: #{tpu_custom_call.1} parent=27 // pred_check
          _
        $region34: #{tpu_custom_call.1} parent=27 // pred_check_branch
          %162 = sbr.rel target = $region36
        $region35: #{tpu_custom_call.1} parent=27 // pred_region
          // Predicated region
          $region48: #{tpu_custom_call.1} parent=35 // pred_check
            _
          $region49: #{tpu_custom_call.1} parent=35 // pred_check_branch
            %178 = sbr.rel (0) target = $region51
          $region50: #{tpu_custom_call.1} parent=35 // pred_region
            %s180 = ssub.s32 16, 1
            loop: start=0, step=1, limit=1
            $region52: #{tpu_custom_call.1} parent=50 // loop_pre_header
              _
            $region53: #{tpu_custom_call.1} parent=50 // loop_header
              %s182 = sphi 0, %s186
              %p183 = scmp.ge.s32.totalorder %s182, 1
              %s187 = sphi %s160, %s160
              %s188 = sphi %s158, %s158
            $region54: #{tpu_custom_call.1} parent=50 // loop_header_branch
              %185 = sbr.rel (%p183) target = $region58
            $region55: #{tpu_custom_call.1} parent=50 // loop_body
              %v189 = vld [vmem:[%s187] sm:%s180]
              %190 = vst [vmem:[%s188] sm:%s180] %v189
            $region56: #{tpu_custom_call.1} parent=50 // loop_footer
              %s186 = sadd.s32 1, %s182
            $region57: #{tpu_custom_call.1} parent=50 // loop_footer_branch
              %181 = sbr.rel target = $region53
            $region58: #{tpu_custom_call.1} parent=50 // loop_exit
              _
          $region51: #{tpu_custom_call.1} parent=35 // pred_fallthru
            _
        $region36: #{tpu_custom_call.1} parent=27 // pred_fallthru
          _
        // Predicated region
        $region37: #{tpu_custom_call.1} parent=27 // pred_check
          _
        $region38: #{tpu_custom_call.1} parent=27 // pred_check_branch
          %164 = sbr.rel (0) target = $region40
        $region39: #{tpu_custom_call.1} parent=27 // pred_region
          %s166 = ssub.s32 16, 1
          loop: start=0, step=1, limit=1
          $region41: #{tpu_custom_call.1} parent=39 // loop_pre_header
            _
          $region42: #{tpu_custom_call.1} parent=39 // loop_header
            %s168 = sphi 0, %s172
            %p169 = scmp.ge.s32.totalorder %s168, 1
            %s173 = sphi %s160, %s160
            %s174 = sphi %s158, %s158
          $region43: #{tpu_custom_call.1} parent=39 // loop_header_branch
            %171 = sbr.rel (%p169) target = $region47
          $region44: #{tpu_custom_call.1} parent=39 // loop_body
            %v175 = vld [vmem:[%s173] sm:%s166]
            %176 = vst [vmem:[%s174] sm:%s166] %v175
          $region45: #{tpu_custom_call.1} parent=39 // loop_footer
            %s172 = sadd.s32 1, %s168
          $region46: #{tpu_custom_call.1} parent=39 // loop_footer_branch
            %167 = sbr.rel target = $region42
          $region47: #{tpu_custom_call.1} parent=39 // loop_exit
            _
        $region40: #{tpu_custom_call.1} parent=27 // pred_fallthru
          _
        // Predicated region
        $region59: #{tpu_custom_call.1} parent=27 // pred_check
          _
        $region60: #{tpu_custom_call.1} parent=27 // pred_check_branch
          %193 = sbr.rel (0) target = $region62
        $region61: #{tpu_custom_call.1} parent=27 // pred_region
          %194 = vsyncadd [#allocation2], 64
        $region62: #{tpu_custom_call.1} parent=27 // pred_fallthru
          _
        %v195 = vld [vmem:[%s153] sm:$0xff]
        %vm196 = vcmp.gt.s32.totalorder %v195, 0
        %v197 = vsel %vm196, %v195, 0
        %vm198 = vcmp.lt.s32.totalorder %v197, 63
        %v199 = vsel %vm198, %v197, 63
        %v200 = vlaneseq
        %v201 = vand.u32 %v200, 127
        %202 = vset.pattern.permute.xlu0 0
        %203 = vperm.xlu0 %202, %v199
        %v204 = vpop.permute.xlu0 %203
        %vm205 = vcmp.eq.s32.totalorder %v201, %v204
        %v206 = vsel %vm205, 1, 0
        %v207 = vcvt.s32.f32 %v206
        %v208 = vld [vmem:[#allocation3] sm:$0xff]
        %v209 = vld [vmem:[#allocation3 + $0x8] sm:$0xff]
        %v210 = vld [vmem:[#allocation3 + $0x10] sm:$0xff]
        %v211 = vld [vmem:[#allocation3 + $0x18] sm:$0xff]
        %v212 = vld [vmem:[#allocation3 + $0x20] sm:$0xff]
        %v213 = vld [vmem:[#allocation3 + $0x28] sm:$0xff]
        %v214 = vld [vmem:[#allocation3 + $0x30] sm:$0xff]
        %v215 = vld [vmem:[#allocation3 + $0x38] sm:$0xff]
        %vm216 = vcmask 523264
        %v218 = vsel %vm216, %v207, 0
        %220 = vmatpush.msra.mxu0 0.0
        %221 = vmatpush.msra.mxu0 0.0
        %222 = vmatpush.msra.mxu0 0.0
        %223 = vmatpush.msra.mxu0 0.0
        %224 = vmatpush.msra.mxu0 0.0
        %225 = vmatpush.msra.mxu0 0.0
        %226 = vmatpush.msra.mxu0 0.0
        %227 = vmatpush.msra.mxu0 0.0
        %228 = vmatpush.msra.mxu0 %v215
        %229 = vmatpush.msra.mxu0 %v214
        %230 = vmatpush.msra.mxu0 %v213
        %231 = vmatpush.msra.mxu0 %v212
        %232 = vmatpush.msra.mxu0 %v211
        %233 = vmatpush.msra.mxu0 %v210
        %234 = vmatpush.msra.mxu0 %v209
        %235 = vmatpush.msra.mxu0 %v208
        %236 = vmatmul.f32.gmra.mxu0 %v218
        %v237 = vpop.f32.mrf.mxu0
        %v238 = vadd.f32 0.0, %v237
        %239 = vdwg.mxu0
        %240 = vst [vmem:[%s158 + $0x4] sm:$0xff] %v238
        %s241 = smul.u32 4, 1
        %s242 = sshll.u32 %s241, 4
        %243 = dma.done [#allocation2], %s242
        %p244 = scmp.lt.s32.totalorder %s15, 1
        %s245 = scalar_select %p244, %s15, 1
        %s246 = smul.addr %s245, 2
        %s247 = smul.addr %s246, 8
        %s248 = scalar_lea.vmem %s3, %s247
        // Predicated region
        $region63: #{tpu_custom_call.1} parent=27 // pred_check
          %p249 = pneg %p80
        $region64: #{tpu_custom_call.1} parent=27 // pred_check_branch
          %251 = sbr.rel (%p249) target = $region66
        $region65: #{tpu_custom_call.1} parent=27 // pred_region
          _
        $region66: #{tpu_custom_call.1} parent=27 // pred_fallthru
          _
      $region28: #{tpu_custom_call.1} parent=5 // pred_fallthru
        _
      %p252 = scmp.le.s32.totalorder 2, %s10
      // Predicated region
      $region67: #{tpu_custom_call.1} parent=5 // pred_check
        %p253 = pneg %p252
      $region68: #{tpu_custom_call.1} parent=5 // pred_check_branch
        %255 = sbr.rel (%p253) target = $region70
      $region69: #{tpu_custom_call.1} parent=5 // pred_region
        %s256 = ssub.s32 %s10, 2
        // Predicated region
        $region71: #{tpu_custom_call.1} parent=69 // pred_check
          %p257 = pneg %p86
        $region72: #{tpu_custom_call.1} parent=69 // pred_check_branch
          %259 = sbr.rel (%p257) target = $region74
        $region73: #{tpu_custom_call.1} parent=69 // pred_region
          %p260 = scmp.lt.s32.totalorder %s16, 1
          %s261 = scalar_select %p260, %s16, 1
          %s262 = smul.addr %s261, 2
          %s263 = smul.addr %s262, 8
          %s264 = scalar_lea.vmem %s3, %s263
        $region74: #{tpu_custom_call.1} parent=69 // pred_fallthru
          _
      $region70: #{tpu_custom_call.1} parent=5 // pred_fallthru
        _
    $region6: #{tpu_custom_call.1} parent=1 // loop_footer
      %s14 = sadd.s32 1, %s10
    $region7: #{tpu_custom_call.1} parent=1 // loop_footer_branch
      %9 = sbr.rel target = $region3
    $region8: #{tpu_custom_call.1} parent=1 // loop_exit
      _
    %265 = vsyncpa [#allocation4], 1
    %s266 = scalar_lea.sflag [#allocation4], 1
    %267 = vsyncpa %s266, 1
  %268 = vsyncmov [#allocation2]
  %s269 = vpop.sfrf %268
  %p270 = scmp.eq.s32.totalorder %s269, 0
  %p271 = pneg %p270
  %273 = shalt.err (%p271)

</llo_original>
